<compile_context>
chip_gen: v6e
topology: v6e:2x2x1
jax: 0.10.0
libtpu: 0.0.40
codegen_flags: <defaults>
</compile_context>

<pallas_src>
import functools

import jax
import jax.numpy as jnp
from jax.experimental import pallas as pl
from jax.experimental.pallas import tpu as pltpu

# TODO(synk): min_value / max_value are undefined in the original PyTorch
# snippet; they are plumbed through as real parameters with deterministic
# defaults for this synthetic test.
MIN_VALUE = -0.5
MAX_VALUE = 0.5

_LANE = 128


def _round_up(v, m):
    return -(-v // m) * m


def _convT1x1_clamp_kernel(x_ref, w_ref, b_ref, o_ref, *, cin, cout,
                           min_value, max_value):
    # x_ref: (Cin, rows_tile, 128)  VMEM  (spatial on both minor dims)
    # w_ref: (Cin, Cout)            SMEM  (scalar reads)
    # b_ref: (Cout,)                SMEM  (scalar reads)
    # o_ref: (Cout, rows_tile, 128) VMEM  (dense, unmasked stores)
    for co in range(cout):
        acc = x_ref[0] * w_ref[0, co]
        for ci in range(1, cin):
            acc = acc + x_ref[ci] * w_ref[ci, co]
        acc = acc + b_ref[co]
        acc = jnp.maximum(acc, min_value)   # clamp_min
        acc = jnp.minimum(acc, max_value)   # clamp_max
        o_ref[co] = acc.astype(o_ref.dtype)


def conv_transpose_1x1_clamp(x_nchw, weight, bias,
                             min_value=MIN_VALUE, max_value=MAX_VALUE,
                             *, rows_cap=1024):
    """x_nchw: (N, Cin, H, W) float32
    weight: PyTorch ConvTranspose2d weight, (Cin, Cout, 1, 1) or (Cin, Cout)
    bias:   (Cout,)
    returns (N, Cout, H, W)
    """
    N, Cin, H, W = x_nchw.shape
    if weight.ndim == 4:                       # raw (Cin, Cout, 1, 1)
        weight = weight[:, :, 0, 0]
    assert weight.shape[0] == Cin, "weight must be (Cin, Cout[,1,1])"
    Cout = weight.shape[1]

    # Keep the SMEM scalar-read path 32-bit friendly.
    weight = weight.astype(jnp.float32)
    bias = bias.astype(jnp.float32)

    # Flatten spatial dims and pad to a lane multiple; single reshape to the
    # (N, C, R, 128) form that matches the BlockSpec (one relayout in/out).
    S = H * W
    S_pad = _round_up(S, _LANE)
    x = x_nchw.reshape(N, Cin, S)
    if S_pad != S:
        x = jnp.pad(x, ((0, 0), (0, 0), (0, S_pad - S)))
    R = S_pad // _LANE
    x = x.reshape(N, Cin, R, _LANE)

    # Spatial row-tile: large fixed tile (~2 MiB f32 input block at Cin=4),
    # multiple of 8; full extent if R is small. With N == 1 make sure there
    # are >= 2 spatial tiles so both v7x TensorCores get work.
    rows_target = rows_cap
    if N == 1:
        rows_target = min(rows_cap, max(8, _round_up(pl.cdiv(R, 2), 8)))
    rows_tile = R if R <= rows_target else rows_target
    grid = (N, pl.cdiv(R, rows_tile))

    kernel = functools.partial(
        _convT1x1_clamp_kernel, cin=Cin, cout=Cout,
        min_value=float(min_value), max_value=float(max_value))

    out = pl.pallas_call(
        kernel,
        out_shape=jax.ShapeDtypeStruct((N, Cout, R, _LANE), x_nchw.dtype),
        grid_spec=pltpu.PrefetchScalarGridSpec(
            num_scalar_prefetch=0,
            grid=grid,
            in_specs=[
                # N dim squeezed away; kernel sees (Cin, rows_tile, 128).
                pl.BlockSpec((None, Cin, rows_tile, _LANE),
                             lambda n, j: (n, 0, j, 0)),
                # Tiny weight / bias live in SMEM (scalar reads, no per-step
                # VMEM DMA, no padded (8,128) tiles).
                pl.BlockSpec(memory_space=pltpu.MemorySpace.SMEM),
                pl.BlockSpec(memory_space=pltpu.MemorySpace.SMEM),
            ],
            out_specs=pl.BlockSpec((None, Cout, rows_tile, _LANE),
                                   lambda n, j: (n, 0, j, 0)),
        ),
        compiler_params=pltpu.CompilerParams(
            dimension_semantics=("parallel", "parallel"),
            vmem_limit_bytes=32 * 1024 * 1024),
    )(x, weight, bias)

    out = out.reshape(N, Cout, S_pad)
    if S_pad != S:
        out = out[:, :, :S]
    return out.reshape(N, Cout, H, W)


def reference(x_nchw, weight, bias, min_value=MIN_VALUE, max_value=MAX_VALUE):
    # Pure-JAX reference of the same math (1x1 conv-transpose + clamp).
    if weight.ndim == 4:
        weight = weight[:, :, 0, 0]
    y = jnp.einsum("nihw,io->nohw", x_nchw, weight) + bias[None, :, None, None]
    return jnp.clip(y, min_value, max_value)


if __name__ == "__main__":
    key = jax.random.PRNGKey(0)
    kx, kw, kb, kx2 = jax.random.split(key, 4)

    # Small shapes consistent with the module (Cin = Cout = 4).
    N, C, Hs, Ws = 2, 4, 16, 16
    x = jax.random.normal(kx, (N, C, Hs, Ws), dtype=jnp.float32)

    # ConvTranspose2d(4, 4, 1) weight: (Cin, Cout, 1, 1); init mimicking
    # PyTorch's uniform(-1/sqrt(fan), 1/sqrt(fan)).
    fan = C * 1 * 1
    bound = 1.0 / (fan ** 0.5)
    weight = jax.random.uniform(kw, (C, C, 1, 1), jnp.float32, -bound, bound)
    bias = jax.random.uniform(kb, (C,), jnp.float32, -bound, bound)

    out = jax.block_until_ready(conv_transpose_1x1_clamp(x, weight, bias))
    ref = reference(x, weight, bias)
    assert out.shape == (N, C, Hs, Ws)
    assert jnp.allclose(out, ref, atol=1e-5, rtol=1e-5)

    # Second check at the module's native shape (1, 4, 124, 124): exercises
    # the pad-to-128 path, the partial trailing spatial block (cdiv grid),
    # and the N == 1 two-tile split.
    x2 = jax.random.normal(kx2, (1, C, 124, 124), dtype=jnp.float32)
    out2 = jax.block_until_ready(conv_transpose_1x1_clamp(x2, weight, bias))
    ref2 = reference(x2, weight, bias)
    assert out2.shape == (1, C, 124, 124)
    assert jnp.allclose(out2, ref2, atol=1e-5, rtol=1e-5)

    print("KERNEL_OK")
</pallas_src>

<mosaic_0001>
module attributes {stable_mosaic.version = 11 : i64} {
  func.func @_convT1x1_clamp_kernel(%arg0: i32, %arg1: i32, %arg2: memref<1x4x2x128xf32, #tpu.memory_space<vmem>>, %arg3: memref<4x4xf32, #tpu.memory_space<smem>>, %arg4: memref<4xf32, #tpu.memory_space<smem>>, %arg5: memref<1x4x2x128xf32, #tpu.memory_space<vmem>>) attributes {dimension_semantics = [#tpu.dimension_semantics<parallel>, #tpu.dimension_semantics<parallel>], iteration_bounds = array<i64: 2, 1>, scalar_prefetch = 0 : i64, scratch_operands = 0 : i64, tpu.core_type = #tpu.core_type<tc>, window_params = [{transform_indices = @transform_0, window_bounds = array<i64: 1, 4, 2, 128>}, {transform_indices = @transform_1, window_bounds = array<i64: 4, 4>}, {transform_indices = @transform_2, window_bounds = array<i64: 4>}, {transform_indices = @transform_3, window_bounds = array<i64: 1, 4, 2, 128>}]} {
    %c0 = arith.constant 0 : index
    %c0_0 = arith.constant 0 : index
    %c0_1 = arith.constant 0 : index
    %c0_2 = arith.constant 0 : index
    %0 = vector.load %arg2[%c0, %c0_0, %c0_1, %c0_2] : memref<1x4x2x128xf32, #tpu.memory_space<vmem>>, vector<1x1x2x128xf32>
    %1 = vector.shape_cast %0 : vector<1x1x2x128xf32> to vector<2x128xf32>
    %c0_3 = arith.constant 0 : index
    %c0_4 = arith.constant 0 : index
    %2 = memref.load %arg3[%c0_3, %c0_4] : memref<4x4xf32, #tpu.memory_space<smem>>
    %3 = vector.broadcast %2 : f32 to vector<2x128xf32>
    %4 = arith.mulf %1, %3 : vector<2x128xf32>
    %c0_5 = arith.constant 0 : index
    %c1 = arith.constant 1 : index
    %c0_6 = arith.constant 0 : index
    %c0_7 = arith.constant 0 : index
    %5 = vector.load %arg2[%c0_5, %c1, %c0_6, %c0_7] : memref<1x4x2x128xf32, #tpu.memory_space<vmem>>, vector<1x1x2x128xf32>
    %6 = vector.shape_cast %5 : vector<1x1x2x128xf32> to vector<2x128xf32>
    %c1_8 = arith.constant 1 : index
    %c0_9 = arith.constant 0 : index
    %7 = memref.load %arg3[%c1_8, %c0_9] : memref<4x4xf32, #tpu.memory_space<smem>>
    %8 = vector.broadcast %7 : f32 to vector<2x128xf32>
    %9 = arith.mulf %6, %8 : vector<2x128xf32>
    %10 = arith.addf %4, %9 : vector<2x128xf32>
    %c0_10 = arith.constant 0 : index
    %c2 = arith.constant 2 : index
    %c0_11 = arith.constant 0 : index
    %c0_12 = arith.constant 0 : index
    %11 = vector.load %arg2[%c0_10, %c2, %c0_11, %c0_12] : memref<1x4x2x128xf32, #tpu.memory_space<vmem>>, vector<1x1x2x128xf32>
    %12 = vector.shape_cast %11 : vector<1x1x2x128xf32> to vector<2x128xf32>
    %c2_13 = arith.constant 2 : index
    %c0_14 = arith.constant 0 : index
    %13 = memref.load %arg3[%c2_13, %c0_14] : memref<4x4xf32, #tpu.memory_space<smem>>
    %14 = vector.broadcast %13 : f32 to vector<2x128xf32>
    %15 = arith.mulf %12, %14 : vector<2x128xf32>
    %16 = arith.addf %10, %15 : vector<2x128xf32>
    %c0_15 = arith.constant 0 : index
    %c3 = arith.constant 3 : index
    %c0_16 = arith.constant 0 : index
    %c0_17 = arith.constant 0 : index
    %17 = vector.load %arg2[%c0_15, %c3, %c0_16, %c0_17] : memref<1x4x2x128xf32, #tpu.memory_space<vmem>>, vector<1x1x2x128xf32>
    %18 = vector.shape_cast %17 : vector<1x1x2x128xf32> to vector<2x128xf32>
    %c3_18 = arith.constant 3 : index
    %c0_19 = arith.constant 0 : index
    %19 = memref.load %arg3[%c3_18, %c0_19] : memref<4x4xf32, #tpu.memory_space<smem>>
    %20 = vector.broadcast %19 : f32 to vector<2x128xf32>
    %21 = arith.mulf %18, %20 : vector<2x128xf32>
    %22 = arith.addf %16, %21 : vector<2x128xf32>
    %c0_20 = arith.constant 0 : index
    %23 = memref.load %arg4[%c0_20] : memref<4xf32, #tpu.memory_space<smem>>
    %24 = vector.broadcast %23 : f32 to vector<2x128xf32>
    %25 = arith.addf %22, %24 : vector<2x128xf32>
    %cst = arith.constant -5.000000e-01 : f32
    %26 = vector.broadcast %cst : f32 to vector<2x128xf32>
    %27 = arith.maximumf %25, %26 : vector<2x128xf32>
    %cst_21 = arith.constant 5.000000e-01 : f32
    %28 = vector.broadcast %cst_21 : f32 to vector<2x128xf32>
    %29 = arith.minimumf %27, %28 : vector<2x128xf32>
    %c0_22 = arith.constant 0 : index
    %c0_23 = arith.constant 0 : index
    %c0_24 = arith.constant 0 : index
    %c0_25 = arith.constant 0 : index
    %30 = vector.load %arg5[%c0_22, %c0_23, %c0_24, %c0_25] : memref<1x4x2x128xf32, #tpu.memory_space<vmem>>, vector<1x1x2x128xf32>
    %31 = vector.shape_cast %30 : vector<1x1x2x128xf32> to vector<2x128xf32>
    %32 = vector.shape_cast %29 : vector<2x128xf32> to vector<1x1x2x128xf32>
    tpu.vector_store %arg5[%c0_22, %c0_23, %c0_24, %c0_25], %32 {strides = array<i32>} : memref<1x4x2x128xf32, #tpu.memory_space<vmem>>, vector<1x1x2x128xf32>,
    %c0_26 = arith.constant 0 : index
    %c0_27 = arith.constant 0 : index
    %c0_28 = arith.constant 0 : index
    %c0_29 = arith.constant 0 : index
    %33 = vector.load %arg2[%c0_26, %c0_27, %c0_28, %c0_29] : memref<1x4x2x128xf32, #tpu.memory_space<vmem>>, vector<1x1x2x128xf32>
    %34 = vector.shape_cast %33 : vector<1x1x2x128xf32> to vector<2x128xf32>
    %c0_30 = arith.constant 0 : index
    %c1_31 = arith.constant 1 : index
    %35 = memref.load %arg3[%c0_30, %c1_31] : memref<4x4xf32, #tpu.memory_space<smem>>
    %36 = vector.broadcast %35 : f32 to vector<2x128xf32>
    %37 = arith.mulf %34, %36 : vector<2x128xf32>
    %c0_32 = arith.constant 0 : index
    %c1_33 = arith.constant 1 : index
    %c0_34 = arith.constant 0 : index
    %c0_35 = arith.constant 0 : index
    %38 = vector.load %arg2[%c0_32, %c1_33, %c0_34, %c0_35] : memref<1x4x2x128xf32, #tpu.memory_space<vmem>>, vector<1x1x2x128xf32>
    %39 = vector.shape_cast %38 : vector<1x1x2x128xf32> to vector<2x128xf32>
    %c1_36 = arith.constant 1 : index
    %c1_37 = arith.constant 1 : index
    %40 = memref.load %arg3[%c1_36, %c1_37] : memref<4x4xf32, #tpu.memory_space<smem>>
    %41 = vector.broadcast %40 : f32 to vector<2x128xf32>
    %42 = arith.mulf %39, %41 : vector<2x128xf32>
    %43 = arith.addf %37, %42 : vector<2x128xf32>
    %c0_38 = arith.constant 0 : index
    %c2_39 = arith.constant 2 : index
    %c0_40 = arith.constant 0 : index
    %c0_41 = arith.constant 0 : index
    %44 = vector.load %arg2[%c0_38, %c2_39, %c0_40, %c0_41] : memref<1x4x2x128xf32, #tpu.memory_space<vmem>>, vector<1x1x2x128xf32>
    %45 = vector.shape_cast %44 : vector<1x1x2x128xf32> to vector<2x128xf32>
    %c2_42 = arith.constant 2 : index
    %c1_43 = arith.constant 1 : index
    %46 = memref.load %arg3[%c2_42, %c1_43] : memref<4x4xf32, #tpu.memory_space<smem>>
    %47 = vector.broadcast %46 : f32 to vector<2x128xf32>
    %48 = arith.mulf %45, %47 : vector<2x128xf32>
    %49 = arith.addf %43, %48 : vector<2x128xf32>
    %c0_44 = arith.constant 0 : index
    %c3_45 = arith.constant 3 : index
    %c0_46 = arith.constant 0 : index
    %c0_47 = arith.constant 0 : index
    %50 = vector.load %arg2[%c0_44, %c3_45, %c0_46, %c0_47] : memref<1x4x2x128xf32, #tpu.memory_space<vmem>>, vector<1x1x2x128xf32>
    %51 = vector.shape_cast %50 : vector<1x1x2x128xf32> to vector<2x128xf32>
    %c3_48 = arith.constant 3 : index
    %c1_49 = arith.constant 1 : index
    %52 = memref.load %arg3[%c3_48, %c1_49] : memref<4x4xf32, #tpu.memory_space<smem>>
    %53 = vector.broadcast %52 : f32 to vector<2x128xf32>
    %54 = arith.mulf %51, %53 : vector<2x128xf32>
    %55 = arith.addf %49, %54 : vector<2x128xf32>
    %c1_50 = arith.constant 1 : index
    %56 = memref.load %arg4[%c1_50] : memref<4xf32, #tpu.memory_space<smem>>
    %57 = vector.broadcast %56 : f32 to vector<2x128xf32>
    %58 = arith.addf %55, %57 : vector<2x128xf32>
    %cst_51 = arith.constant -5.000000e-01 : f32
    %59 = vector.broadcast %cst_51 : f32 to vector<2x128xf32>
    %60 = arith.maximumf %58, %59 : vector<2x128xf32>
    %cst_52 = arith.constant 5.000000e-01 : f32
    %61 = vector.broadcast %cst_52 : f32 to vector<2x128xf32>
    %62 = arith.minimumf %60, %61 : vector<2x128xf32>
    %c0_53 = arith.constant 0 : index
    %c1_54 = arith.constant 1 : index
    %c0_55 = arith.constant 0 : index
    %c0_56 = arith.constant 0 : index
    %63 = vector.load %arg5[%c0_53, %c1_54, %c0_55, %c0_56] : memref<1x4x2x128xf32, #tpu.memory_space<vmem>>, vector<1x1x2x128xf32>
    %64 = vector.shape_cast %63 : vector<1x1x2x128xf32> to vector<2x128xf32>
    %65 = vector.shape_cast %62 : vector<2x128xf32> to vector<1x1x2x128xf32>
    tpu.vector_store %arg5[%c0_53, %c1_54, %c0_55, %c0_56], %65 {strides = array<i32>} : memref<1x4x2x128xf32, #tpu.memory_space<vmem>>, vector<1x1x2x128xf32>,
    %c0_57 = arith.constant 0 : index
    %c0_58 = arith.constant 0 : index
    %c0_59 = arith.constant 0 : index
    %c0_60 = arith.constant 0 : index
    %66 = vector.load %arg2[%c0_57, %c0_58, %c0_59, %c0_60] : memref<1x4x2x128xf32, #tpu.memory_space<vmem>>, vector<1x1x2x128xf32>
    %67 = vector.shape_cast %66 : vector<1x1x2x128xf32> to vector<2x128xf32>
    %c0_61 = arith.constant 0 : index
    %c2_62 = arith.constant 2 : index
    %68 = memref.load %arg3[%c0_61, %c2_62] : memref<4x4xf32, #tpu.memory_space<smem>>
    %69 = vector.broadcast %68 : f32 to vector<2x128xf32>
    %70 = arith.mulf %67, %69 : vector<2x128xf32>
    %c0_63 = arith.constant 0 : index
    %c1_64 = arith.constant 1 : index
    %c0_65 = arith.constant 0 : index
    %c0_66 = arith.constant 0 : index
    %71 = vector.load %arg2[%c0_63, %c1_64, %c0_65, %c0_66] : memref<1x4x2x128xf32, #tpu.memory_space<vmem>>, vector<1x1x2x128xf32>
    %72 = vector.shape_cast %71 : vector<1x1x2x128xf32> to vector<2x128xf32>
    %c1_67 = arith.constant 1 : index
    %c2_68 = arith.constant 2 : index
    %73 = memref.load %arg3[%c1_67, %c2_68] : memref<4x4xf32, #tpu.memory_space<smem>>
    %74 = vector.broadcast %73 : f32 to vector<2x128xf32>
    %75 = arith.mulf %72, %74 : vector<2x128xf32>
    %76 = arith.addf %70, %75 : vector<2x128xf32>
    %c0_69 = arith.constant 0 : index
    %c2_70 = arith.constant 2 : index
    %c0_71 = arith.constant 0 : index
    %c0_72 = arith.constant 0 : index
    %77 = vector.load %arg2[%c0_69, %c2_70, %c0_71, %c0_72] : memref<1x4x2x128xf32, #tpu.memory_space<vmem>>, vector<1x1x2x128xf32>
    %78 = vector.shape_cast %77 : vector<1x1x2x128xf32> to vector<2x128xf32>
    %c2_73 = arith.constant 2 : index
    %c2_74 = arith.constant 2 : index
    %79 = memref.load %arg3[%c2_73, %c2_74] : memref<4x4xf32, #tpu.memory_space<smem>>
    %80 = vector.broadcast %79 : f32 to vector<2x128xf32>
    %81 = arith.mulf %78, %80 : vector<2x128xf32>
    %82 = arith.addf %76, %81 : vector<2x128xf32>
    %c0_75 = arith.constant 0 : index
    %c3_76 = arith.constant 3 : index
    %c0_77 = arith.constant 0 : index
    %c0_78 = arith.constant 0 : index
    %83 = vector.load %arg2[%c0_75, %c3_76, %c0_77, %c0_78] : memref<1x4x2x128xf32, #tpu.memory_space<vmem>>, vector<1x1x2x128xf32>
    %84 = vector.shape_cast %83 : vector<1x1x2x128xf32> to vector<2x128xf32>
    %c3_79 = arith.constant 3 : index
    %c2_80 = arith.constant 2 : index
    %85 = memref.load %arg3[%c3_79, %c2_80] : memref<4x4xf32, #tpu.memory_space<smem>>
    %86 = vector.broadcast %85 : f32 to vector<2x128xf32>
    %87 = arith.mulf %84, %86 : vector<2x128xf32>
    %88 = arith.addf %82, %87 : vector<2x128xf32>
    %c2_81 = arith.constant 2 : index
    %89 = memref.load %arg4[%c2_81] : memref<4xf32, #tpu.memory_space<smem>>
    %90 = vector.broadcast %89 : f32 to vector<2x128xf32>
    %91 = arith.addf %88, %90 : vector<2x128xf32>
    %cst_82 = arith.constant -5.000000e-01 : f32
    %92 = vector.broadcast %cst_82 : f32 to vector<2x128xf32>
    %93 = arith.maximumf %91, %92 : vector<2x128xf32>
    %cst_83 = arith.constant 5.000000e-01 : f32
    %94 = vector.broadcast %cst_83 : f32 to vector<2x128xf32>
    %95 = arith.minimumf %93, %94 : vector<2x128xf32>
    %c0_84 = arith.constant 0 : index
    %c2_85 = arith.constant 2 : index
    %c0_86 = arith.constant 0 : index
    %c0_87 = arith.constant 0 : index
    %96 = vector.load %arg5[%c0_84, %c2_85, %c0_86, %c0_87] : memref<1x4x2x128xf32, #tpu.memory_space<vmem>>, vector<1x1x2x128xf32>
    %97 = vector.shape_cast %96 : vector<1x1x2x128xf32> to vector<2x128xf32>
    %98 = vector.shape_cast %95 : vector<2x128xf32> to vector<1x1x2x128xf32>
    tpu.vector_store %arg5[%c0_84, %c2_85, %c0_86, %c0_87], %98 {strides = array<i32>} : memref<1x4x2x128xf32, #tpu.memory_space<vmem>>, vector<1x1x2x128xf32>,
    %c0_88 = arith.constant 0 : index
    %c0_89 = arith.constant 0 : index
    %c0_90 = arith.constant 0 : index
    %c0_91 = arith.constant 0 : index
    %99 = vector.load %arg2[%c0_88, %c0_89, %c0_90, %c0_91] : memref<1x4x2x128xf32, #tpu.memory_space<vmem>>, vector<1x1x2x128xf32>
    %100 = vector.shape_cast %99 : vector<1x1x2x128xf32> to vector<2x128xf32>
    %c0_92 = arith.constant 0 : index
    %c3_93 = arith.constant 3 : index
    %101 = memref.load %arg3[%c0_92, %c3_93] : memref<4x4xf32, #tpu.memory_space<smem>>
    %102 = vector.broadcast %101 : f32 to vector<2x128xf32>
    %103 = arith.mulf %100, %102 : vector<2x128xf32>
    %c0_94 = arith.constant 0 : index
    %c1_95 = arith.constant 1 : index
    %c0_96 = arith.constant 0 : index
    %c0_97 = arith.constant 0 : index
    %104 = vector.load %arg2[%c0_94, %c1_95, %c0_96, %c0_97] : memref<1x4x2x128xf32, #tpu.memory_space<vmem>>, vector<1x1x2x128xf32>
    %105 = vector.shape_cast %104 : vector<1x1x2x128xf32> to vector<2x128xf32>
    %c1_98 = arith.constant 1 : index
    %c3_99 = arith.constant 3 : index
    %106 = memref.load %arg3[%c1_98, %c3_99] : memref<4x4xf32, #tpu.memory_space<smem>>
    %107 = vector.broadcast %106 : f32 to vector<2x128xf32>
    %108 = arith.mulf %105, %107 : vector<2x128xf32>
    %109 = arith.addf %103, %108 : vector<2x128xf32>
    %c0_100 = arith.constant 0 : index
    %c2_101 = arith.constant 2 : index
    %c0_102 = arith.constant 0 : index
    %c0_103 = arith.constant 0 : index
    %110 = vector.load %arg2[%c0_100, %c2_101, %c0_102, %c0_103] : memref<1x4x2x128xf32, #tpu.memory_space<vmem>>, vector<1x1x2x128xf32>
    %111 = vector.shape_cast %110 : vector<1x1x2x128xf32> to vector<2x128xf32>
    %c2_104 = arith.constant 2 : index
    %c3_105 = arith.constant 3 : index
    %112 = memref.load %arg3[%c2_104, %c3_105] : memref<4x4xf32, #tpu.memory_space<smem>>
    %113 = vector.broadcast %112 : f32 to vector<2x128xf32>
    %114 = arith.mulf %111, %113 : vector<2x128xf32>
    %115 = arith.addf %109, %114 : vector<2x128xf32>
    %c0_106 = arith.constant 0 : index
    %c3_107 = arith.constant 3 : index
    %c0_108 = arith.constant 0 : index
    %c0_109 = arith.constant 0 : index
    %116 = vector.load %arg2[%c0_106, %c3_107, %c0_108, %c0_109] : memref<1x4x2x128xf32, #tpu.memory_space<vmem>>, vector<1x1x2x128xf32>
    %117 = vector.shape_cast %116 : vector<1x1x2x128xf32> to vector<2x128xf32>
    %c3_110 = arith.constant 3 : index
    %c3_111 = arith.constant 3 : index
    %118 = memref.load %arg3[%c3_110, %c3_111] : memref<4x4xf32, #tpu.memory_space<smem>>
    %119 = vector.broadcast %118 : f32 to vector<2x128xf32>
    %120 = arith.mulf %117, %119 : vector<2x128xf32>
    %121 = arith.addf %115, %120 : vector<2x128xf32>
    %c3_112 = arith.constant 3 : index
    %122 = memref.load %arg4[%c3_112] : memref<4xf32, #tpu.memory_space<smem>>
    %123 = vector.broadcast %122 : f32 to vector<2x128xf32>
    %124 = arith.addf %121, %123 : vector<2x128xf32>
    %cst_113 = arith.constant -5.000000e-01 : f32
    %125 = vector.broadcast %cst_113 : f32 to vector<2x128xf32>
    %126 = arith.maximumf %124, %125 : vector<2x128xf32>
    %cst_114 = arith.constant 5.000000e-01 : f32
    %127 = vector.broadcast %cst_114 : f32 to vector<2x128xf32>
    %128 = arith.minimumf %126, %127 : vector<2x128xf32>
    %c0_115 = arith.constant 0 : index
    %c3_116 = arith.constant 3 : index
    %c0_117 = arith.constant 0 : index
    %c0_118 = arith.constant 0 : index
    %129 = vector.load %arg5[%c0_115, %c3_116, %c0_117, %c0_118] : memref<1x4x2x128xf32, #tpu.memory_space<vmem>>, vector<1x1x2x128xf32>
    %130 = vector.shape_cast %129 : vector<1x1x2x128xf32> to vector<2x128xf32>
    %131 = vector.shape_cast %128 : vector<2x128xf32> to vector<1x1x2x128xf32>
    tpu.vector_store %arg5[%c0_115, %c3_116, %c0_117, %c0_118], %131 {strides = array<i32>} : memref<1x4x2x128xf32, #tpu.memory_space<vmem>>, vector<1x1x2x128xf32>,
    return
  }
  func.func @transform_0(%arg0: i32, %arg1: i32) -> (i32, i32, i32, i32) {
    %c0_i32 = arith.constant 0 : i32
    %c0_i32_0 = arith.constant 0 : i32
    %c0_i32_1 = arith.constant 0 : i32
    return %arg0, %c0_i32, %arg1, %c0_i32_0 : i32, i32, i32, i32
  }
  func.func @transform_1(%arg0: i32, %arg1: i32) -> (i32, i32) {
    %c0_i32 = arith.constant 0 : i32
    %c0_i32_0 = arith.constant 0 : i32
    %c0_i32_1 = arith.constant 0 : i32
    return %c0_i32, %c0_i32_0 : i32, i32
  }
  func.func @transform_2(%arg0: i32, %arg1: i32) -> i32 {
    %c0_i32 = arith.constant 0 : i32
    %c0_i32_0 = arith.constant 0 : i32
    return %c0_i32 : i32
  }
  func.func @transform_3(%arg0: i32, %arg1: i32) -> (i32, i32, i32, i32) {
    %c0_i32 = arith.constant 0 : i32
    %c0_i32_0 = arith.constant 0 : i32
    %c0_i32_1 = arith.constant 0 : i32
    return %arg0, %c0_i32, %arg1, %c0_i32_0 : i32, i32, i32, i32
  }
}

</mosaic_0001>

<llo_original>
// kernel: tpu_custom_call.1
$region0: #{tpu_custom_call.1}
  #allocation0 [shape = 'u32[]', space=smem, size = 0x4, offset = 0x4, fixed_abs, tag = 'smem constant byte address 0x4 - core index']
  #allocation1 [shape = 'u32[144,128]{1,0:T(1,128)}', space=vmem, size = 0x12000, scoped, tag = 'internal scratch']
  %s0 = inlined_call_operand.hbm [shape: f32[2,4,2,128], index: 0, kind: input, shape index: {}]
  %s1 = inlined_call_operand.hbm [shape: f32[4,4], index: 1, kind: input, shape index: {}]
  %s2 = inlined_call_operand.vmem [shape: f32[4], index: 2, kind: input, shape index: {}]
  %s3 = inlined_call_operand.hbm [shape: f32[2,4,2,128], index: 3, kind: output, shape index: {}]
  %s4 = sld [smem:[#allocation0]]
  $region57: #{tpu_custom_call.1} parent=0
    _
  %s6 = ssub.s32 1, %s4
  %s7 = scalar_select 0, %s6, %s4
  $region1: #{tpu_custom_call.1} parent=0
    #allocation2 [shape = 'u8[8192]{0}', space=vmem, size = 0x2000, scoped, tag = 'input window, operand 0']
    #allocation3 [shape = 's32[2]{0}', space=sflag, size = 0x8, scoped, tag = 'scoped memory for tpu_custom_call.1']
    #allocation4 [shape = 's32[2]{0}', space=sflag, size = 0x8, scoped, tag = 'scoped memory for tpu_custom_call.1']
    #allocation5 [shape = 's32[2]{0}', space=sflag, size = 0x8, scoped, tag = 'scoped memory for tpu_custom_call.1']
    #allocation6 [shape = 's32[2]{0}', space=sflag, size = 0x8, scoped, tag = 'scoped memory for tpu_custom_call.1']
    #allocation7 [shape = 'u8[2048]{0}', space=smem, size = 0x800, scoped, tag = 'input window, operand 1, single buffered']
    #allocation8 [shape = 'u8[512]{0}', space=smem, size = 0x200, scoped, tag = 'input window, operand 2, single buffered']
    #allocation9 [shape = 'u8[8192]{0}', space=vmem, size = 0x2000, scoped, tag = 'output window, operand 0']
    %8 = vsyncpa [#allocation3], 0
    %s9 = scalar_lea.sflag [#allocation3], 1
    %10 = vsyncpa %s9, 0
    %11 = vsyncpa [#allocation5], 0
    %12 = vsyncpa [#allocation6], 0
    %13 = vsyncpa [#allocation4], 0
    %s14 = scalar_lea.sflag [#allocation4], 1
    %15 = vsyncpa %s14, 0
    loop: start=0, step=1, limit=4
    $region2: #{tpu_custom_call.1} parent=1 // loop_pre_header
      _
    $region3: #{tpu_custom_call.1} parent=1 // loop_header
      %s17 = sphi 0, %s21
      %p18 = scmp.ge.s32.totalorder %s17, 4
      %s24 = sphi 0, %s36
      %s25 = sphi 0, %s32
      %s26 = sphi 0, %s24
      %s27 = sphi 0, %s25
      %s28 = sphi 0, %s26
      %s29 = sphi 0, %s27
      %s41 = sphi 0, %s43
      %s44 = sphi 0, %s41
      %s45 = sphi 0, %s44
      %s61 = sphi 0, %s45
      %s65 = sphi 0, %s65
      %s67 = sphi 0, %s65
      %s68 = sphi 0, %s67
      %s82 = sphi 0, %s68
      %s86 = sphi 0, %s86
      %s88 = sphi 0, %s86
      %s89 = sphi 0, %s88
      %s103 = sphi 0, %s89
      %s111 = sphi 0, %s113
      %s114 = sphi 0, %s111
      %s115 = sphi 0, %s114
      %s131 = sphi 0, %s115
    $region4: #{tpu_custom_call.1} parent=1 // loop_header_branch
      %20 = sbr.rel (%p18) target = $region8
    $region5: #{tpu_custom_call.1} parent=1 // loop_body
      %s22 = ssub.s32 %s17, 1
      %s23 = ssub.s32 %s17, 2
      %s30 = sadd.s32 1, %s25
      %p31 = scmp.ge.s32.totalorder %s30, 1
      %s32 = scalar_select %p31, 0, %s30
      %s33 = sadd.s32 1, %s24
      %s34 = scalar_select %p31, %s33, %s24
      %p35 = scmp.ge.s32.totalorder %s34, 2
      %s36 = scalar_select %p35, 0, %s34
      %s37 = ssub.s32 %s24, %s36
      %s38 = ssub.s32 %s25, %s32
      %s39 = sor.u32 %s37, %s38
      %p40 = scmp.eq.s32.totalorder %s39, 0
      %s42 = sadd.s32 %s41, 1
      %s43 = scalar_select %p40, %s41, %s42
      %p46 = pneg %p40
      %p47 = scmp.eq.s32.totalorder %s17, 1
      %p48 = por %p46, %p47
      %p49 = scmp.ne.s32.totalorder %s41, %s44
      %p50 = scmp.eq.s32.totalorder %s17, 0
      %p51 = por %p49, %p50
      %p52 = scmp.ne.s32.totalorder %s41, %s44
      %p53 = scmp.eq.s32.totalorder %s22, 1
      %p54 = por %p52, %p53
      %p55 = scmp.ne.s32.totalorder %s44, %s45
      %p56 = scmp.eq.s32.totalorder %s22, 0
      %p57 = por %p55, %p56
      %p58 = scmp.ne.s32.totalorder %s44, %s45
      %p59 = scmp.eq.s32.totalorder %s23, 1
      %p60 = por %p58, %p59
      %p62 = scmp.ne.s32.totalorder %s45, %s61
      %p63 = scmp.eq.s32.totalorder %s23, 0
      %p64 = por %p62, %p63
      %s66 = sadd.s32 %s65, 1
      %p69 = scmp.eq.s32.totalorder %s17, 1
      %p70 = scmp.ne.s32.totalorder %s65, %s67
      %p71 = scmp.eq.s32.totalorder %s17, 0
      %p72 = por %p70, %p71
      %p73 = scmp.ne.s32.totalorder %s65, %s67
      %p74 = scmp.eq.s32.totalorder %s22, 1
      %p75 = por %p73, %p74
      %p76 = scmp.ne.s32.totalorder %s67, %s68
      %p77 = scmp.eq.s32.totalorder %s22, 0
      %p78 = por %p76, %p77
      %p79 = scmp.ne.s32.totalorder %s67, %s68
      %p80 = scmp.eq.s32.totalorder %s23, 1
      %p81 = por %p79, %p80
      %p83 = scmp.ne.s32.totalorder %s68, %s82
      %p84 = scmp.eq.s32.totalorder %s23, 0
      %p85 = por %p83, %p84
      %s87 = sadd.s32 %s86, 1
      %p90 = scmp.eq.s32.totalorder %s17, 1
      %p91 = scmp.ne.s32.totalorder %s86, %s88
      %p92 = scmp.eq.s32.totalorder %s17, 0
      %p93 = por %p91, %p92
      %p94 = scmp.ne.s32.totalorder %s86, %s88
      %p95 = scmp.eq.s32.totalorder %s22, 1
      %p96 = por %p94, %p95
      %p97 = scmp.ne.s32.totalorder %s88, %s89
      %p98 = scmp.eq.s32.totalorder %s22, 0
      %p99 = por %p97, %p98
      %p100 = scmp.ne.s32.totalorder %s88, %s89
      %p101 = scmp.eq.s32.totalorder %s23, 1
      %p102 = por %p100, %p101
      %p104 = scmp.ne.s32.totalorder %s89, %s103
      %p105 = scmp.eq.s32.totalorder %s23, 0
      %p106 = por %p104, %p105
      %s107 = ssub.s32 %s24, %s36
      %s108 = ssub.s32 %s25, %s32
      %s109 = sor.u32 %s107, %s108
      %p110 = scmp.eq.s32.totalorder %s109, 0
      %s112 = sadd.s32 %s111, 1
      %s113 = scalar_select %p110, %s111, %s112
      %p116 = pneg %p110
      %p117 = scmp.eq.s32.totalorder %s17, 1
      %p118 = por %p116, %p117
      %p119 = scmp.ne.s32.totalorder %s111, %s114
      %p120 = scmp.eq.s32.totalorder %s17, 0
      %p121 = por %p119, %p120
      %p122 = scmp.ne.s32.totalorder %s111, %s114
      %p123 = scmp.eq.s32.totalorder %s22, 1
      %p124 = por %p122, %p123
      %p125 = scmp.ne.s32.totalorder %s114, %s115
      %p126 = scmp.eq.s32.totalorder %s22, 0
      %p127 = por %p125, %p126
      %p128 = scmp.ne.s32.totalorder %s114, %s115
      %p129 = scmp.eq.s32.totalorder %s23, 1
      %p130 = por %p128, %p129
      %p132 = scmp.ne.s32.totalorder %s115, %s131
      %p133 = scmp.eq.s32.totalorder %s23, 0
      %p134 = por %p132, %p133
      %p135 = scmp.le.s32.totalorder 1, %s17
      %p136 = scmp.lt.s32.totalorder %s17, 3
      %p137 = pnand %p135, %p136
      %p138 = pneg %p137
      // Predicated region
      $region9: #{tpu_custom_call.1} parent=5 // pred_check
        _
      $region10: #{tpu_custom_call.1} parent=5 // pred_check_branch
        %140 = sbr.rel (%p137) target = $region12
      $region11: #{tpu_custom_call.1} parent=5 // pred_region
        %s141 = ssub.s32 %s17, 1
        // Predicated region
        $region13: #{tpu_custom_call.1} parent=11 // pred_check
          %p142 = pneg %p78
        $region14: #{tpu_custom_call.1} parent=11 // pred_check_branch
          %144 = sbr.rel (%p142) target = $region16
        $region15: #{tpu_custom_call.1} parent=11 // pred_region
          %s146 = ssub.s32 64, 64
          %147 = vsyncadd [#allocation5], %s146
          %150 = dma.hbm_to_smem %s1, 64, [#allocation7], [#allocation5]
        $region16: #{tpu_custom_call.1} parent=11 // pred_fallthru
          _
        // Predicated region
        $region17: #{tpu_custom_call.1} parent=11 // pred_check
          %p151 = pneg %p99
        $region18: #{tpu_custom_call.1} parent=11 // pred_check_branch
          %153 = sbr.rel (%p151) target = $region20
        $region19: #{tpu_custom_call.1} parent=11 // pred_region
          %s155 = ssub.s32 16, 16
          %156 = vsyncadd [#allocation6], %s155
          %s158 = sshll.u32 %s2, 4
          %s159 = int_to_ptr.vmem [resolvable:$true] %s158
          %161 = dma.vmem_to_smem %s159, 16, [#allocation8], [#allocation6]
        $region20: #{tpu_custom_call.1} parent=11 // pred_fallthru
          _
      $region12: #{tpu_custom_call.1} parent=5 // pred_fallthru
        _
      %p162 = scmp.lt.s32.totalorder %s17, 2
      // Predicated region
      $region21: #{tpu_custom_call.1} parent=5 // pred_check
        %p163 = pneg %p162
      $region22: #{tpu_custom_call.1} parent=5 // pred_check_branch
        %165 = sbr.rel (%p163) target = $region24
      $region23: #{tpu_custom_call.1} parent=5 // pred_region
        // Predicated region
        $region25: #{tpu_custom_call.1} parent=23 // pred_check
          %p166 = pneg %p51
        $region26: #{tpu_custom_call.1} parent=23 // pred_check_branch
          %168 = sbr.rel (%p166) target = $region28
        $region27: #{tpu_custom_call.1} parent=23 // pred_region
          %s169 = sand.u32 %s41, 1
          %s170 = scalar_lea.sflag [#allocation3], %s169
          %s171 = sand.u32 %s41, 1
          %s172 = smul.addr %s171, 8
          %s173 = scalar_lea.vmem [#allocation2], %s172
          %s175 = ssub.s32 128, 128
          %176 = vsyncadd %s170, %s175
          %s177 = smul.addr %s24, 4
          %s178 = sadd.s32 %s25, %s177
          %s179 = smul.addr %s178, 32
          %s180 = scalar_lea.hbm %s0, %s179
          %s181 = sshll.u32 %s173, 4
          %s182 = int_to_ptr.vmem [resolvable:$true] %s181
          %187 = dma.hbm_to_vmem [thread:$0]  %s180, 128, %s182, %s170, 32, 32, 2
        $region28: #{tpu_custom_call.1} parent=23 // pred_fallthru
          _
      $region24: #{tpu_custom_call.1} parent=5 // pred_fallthru
        _
      %p188 = scmp.le.s32.totalorder 1, %s17
      %p189 = scmp.lt.s32.totalorder %s17, 3
      %p190 = pnand %p188, %p189
      %p191 = pneg %p190
      // Predicated region
      $region29: #{tpu_custom_call.1} parent=5 // pred_check
        _
      $region30: #{tpu_custom_call.1} parent=5 // pred_check_branch
        %193 = sbr.rel (%p190) target = $region32
      $region31: #{tpu_custom_call.1} parent=5 // pred_region
        %s194 = ssub.s32 %s17, 1
        %s195 = sand.u32 %s44, 1
        %s196 = scalar_lea.sflag [#allocation3], %s195
        %s197 = sand.u32 %s44, 1
        %s198 = smul.addr %s197, 8
        %s199 = scalar_lea.vmem [#allocation2], %s198
        // Predicated region
        $region33: #{tpu_custom_call.1} parent=31 // pred_check
          %p200 = pneg %p57
        $region34: #{tpu_custom_call.1} parent=31 // pred_check_branch
          %202 = sbr.rel (%p200) target = $region36
        $region35: #{tpu_custom_call.1} parent=31 // pred_region
          %203 = dma.done %s196, 128
        $region36: #{tpu_custom_call.1} parent=31 // pred_fallthru
          _
        // Predicated region
        $region37: #{tpu_custom_call.1} parent=31 // pred_check
          %p204 = pneg %p78
        $region38: #{tpu_custom_call.1} parent=31 // pred_check_branch
          %206 = sbr.rel (%p204) target = $region40
        $region39: #{tpu_custom_call.1} parent=31 // pred_region
          %207 = dma.done [#allocation5], 64
        $region40: #{tpu_custom_call.1} parent=31 // pred_fallthru
          _
        // Predicated region
        $region41: #{tpu_custom_call.1} parent=31 // pred_check
          %p208 = pneg %p99
        $region42: #{tpu_custom_call.1} parent=31 // pred_check_branch
          %210 = sbr.rel (%p208) target = $region44
        $region43: #{tpu_custom_call.1} parent=31 // pred_region
          %211 = dma.done [#allocation6], 16
        $region44: #{tpu_custom_call.1} parent=31 // pred_fallthru
          _
        %212 = sfence
        %s213 = sand.u32 %s44, 1
        %s214 = scalar_lea.sflag [#allocation3], %s213
        %s215 = sand.u32 %s44, 1
        %s216 = smul.addr %s215, 8
        %s217 = scalar_lea.vmem [#allocation2], %s216
        %p218 = pneg %p57
        %p219 = pneg %p54
        %p220 = pneg %p78
        %p221 = pneg %p75
        %p222 = pneg %p99
        %p223 = pneg %p96
        %p224 = pneg %p127
        %p225 = pneg %p124
        %s226 = sand.u32 %s114, 1
        %s227 = scalar_lea.sflag [#allocation4], %s226
        %s228 = sand.u32 %s114, 1
        %s229 = smul.addr %s228, 8
        %s230 = scalar_lea.vmem [#allocation9], %s229
        %v231 = vld [vmem:[%s199] sm:$0x3]
        %s232 = sld [smem:[#allocation7]]
        %v233 = vstv %s232
        %v234 = vmul.f32 %v231, %v233
        %s235 = scalar_lea.vmem %s199, 2 [#allocation2]
        %v236 = vld [vmem:[%s235] sm:$0x3]
        %s237 = sld [smem:[#allocation7 + $0x80]]
        %v238 = vstv %s237
        %v239 = vmul.f32 %v236, %v238
        %v240 = vadd.f32 %v234, %v239
        %s241 = scalar_lea.vmem %s199, 4 [#allocation2]
        %v242 = vld [vmem:[%s241] sm:$0x3]
        %s243 = sld [smem:[#allocation7 + $0x100]]
        %v244 = vstv %s243
        %v245 = vmul.f32 %v242, %v244
        %v246 = vadd.f32 %v240, %v245
        %s247 = scalar_lea.vmem %s199, 6 [#allocation2]
        %v248 = vld [vmem:[%s247] sm:$0x3]
        %s249 = sld [smem:[#allocation7 + $0x180]]
        %v250 = vstv %s249
        %v251 = vmul.f32 %v248, %v250
        %v252 = vadd.f32 %v246, %v251
        %s253 = sld [smem:[#allocation8]]
        %v254 = vstv %s253
        %v255 = vadd.f32 %v252, %v254
        %v256 = vmax.f32 %v255, -0.5
        %v257 = vmin.f32 %v256, 0.5
        %258 = vst [vmem:[%s230] sm:$0x3] %v257
        %v259 = vld [vmem:[%s199] sm:$0x3]
        %s260 = sld [smem:[#allocation7 + $0x1]]
        %v261 = vstv %s260
        %v262 = vmul.f32 %v259, %v261
        %v263 = vld [vmem:[%s235] sm:$0x3]
        %s264 = sld [smem:[#allocation7 + $0x81]]
        %v265 = vstv %s264
        %v266 = vmul.f32 %v263, %v265
        %v267 = vadd.f32 %v262, %v266
        %v268 = vld [vmem:[%s241] sm:$0x3]
        %s269 = sld [smem:[#allocation7 + $0x101]]
        %v270 = vstv %s269
        %v271 = vmul.f32 %v268, %v270
        %v272 = vadd.f32 %v267, %v271
        %v273 = vld [vmem:[%s247] sm:$0x3]
        %s274 = sld [smem:[#allocation7 + $0x181]]
        %v275 = vstv %s274
        %v276 = vmul.f32 %v273, %v275
        %v277 = vadd.f32 %v272, %v276
        %s278 = sld [smem:[#allocation8 + $0x1]]
        %v279 = vstv %s278
        %v280 = vadd.f32 %v277, %v279
        %v281 = vmax.f32 %v280, -0.5
        %v282 = vmin.f32 %v281, 0.5
        %s283 = scalar_lea.vmem %s230, 2 [#allocation9]
        %284 = vst [vmem:[%s283] sm:$0x3] %v282
        %v285 = vld [vmem:[%s199] sm:$0x3]
        %s286 = sld [smem:[#allocation7 + $0x2]]
        %v287 = vstv %s286
        %v288 = vmul.f32 %v285, %v287
        %v289 = vld [vmem:[%s235] sm:$0x3]
        %s290 = sld [smem:[#allocation7 + $0x82]]
        %v291 = vstv %s290
        %v292 = vmul.f32 %v289, %v291
        %v293 = vadd.f32 %v288, %v292
        %v294 = vld [vmem:[%s241] sm:$0x3]
        %s295 = sld [smem:[#allocation7 + $0x102]]
        %v296 = vstv %s295
        %v297 = vmul.f32 %v294, %v296
        %v298 = vadd.f32 %v293, %v297
        %v299 = vld [vmem:[%s247] sm:$0x3]
        %s300 = sld [smem:[#allocation7 + $0x182]]
        %v301 = vstv %s300
        %v302 = vmul.f32 %v299, %v301
        %v303 = vadd.f32 %v298, %v302
        %s304 = sld [smem:[#allocation8 + $0x2]]
        %v305 = vstv %s304
        %v306 = vadd.f32 %v303, %v305
        %v307 = vmax.f32 %v306, -0.5
        %v308 = vmin.f32 %v307, 0.5
        %s309 = scalar_lea.vmem %s230, 4 [#allocation9]
        %310 = vst [vmem:[%s309] sm:$0x3] %v308
        %v311 = vld [vmem:[%s199] sm:$0x3]
        %s312 = sld [smem:[#allocation7 + $0x3]]
        %v313 = vstv %s312
        %v314 = vmul.f32 %v311, %v313
        %v315 = vld [vmem:[%s235] sm:$0x3]
        %s316 = sld [smem:[#allocation7 + $0x83]]
        %v317 = vstv %s316
        %v318 = vmul.f32 %v315, %v317
        %v319 = vadd.f32 %v314, %v318
        %v320 = vld [vmem:[%s241] sm:$0x3]
        %s321 = sld [smem:[#allocation7 + $0x103]]
        %v322 = vstv %s321
        %v323 = vmul.f32 %v320, %v322
        %v324 = vadd.f32 %v319, %v323
        %v325 = vld [vmem:[%s247] sm:$0x3]
        %s326 = sld [smem:[#allocation7 + $0x183]]
        %v327 = vstv %s326
        %v328 = vmul.f32 %v325, %v327
        %v329 = vadd.f32 %v324, %v328
        %s330 = sld [smem:[#allocation8 + $0x3]]
        %v331 = vstv %s330
        %v332 = vadd.f32 %v329, %v331
        %v333 = vmax.f32 %v332, -0.5
        %v334 = vmin.f32 %v333, 0.5
        %s335 = scalar_lea.vmem %s230, 6 [#allocation9]
        %336 = vst [vmem:[%s335] sm:$0x3] %v334
        %s337 = sand.u32 %s114, 1
        %s338 = scalar_lea.sflag [#allocation4], %s337
        %s339 = sand.u32 %s114, 1
        %s340 = smul.addr %s339, 8
        %s341 = scalar_lea.vmem [#allocation9], %s340
        // Predicated region
        $region45: #{tpu_custom_call.1} parent=31 // pred_check
          %p342 = pneg %p124
        $region46: #{tpu_custom_call.1} parent=31 // pred_check_branch
          %344 = sbr.rel (%p342) target = $region48
        $region47: #{tpu_custom_call.1} parent=31 // pred_region
          %s346 = ssub.s32 128, 128
          %347 = vsyncadd %s338, %s346
          %s348 = smul.addr %s26, 4
          %s349 = sadd.s32 %s27, %s348
          %s350 = smul.addr %s349, 32
          %s351 = scalar_lea.hbm %s3, %s350
          %s352 = sshll.u32 %s341, 4
          %s353 = int_to_ptr.vmem [resolvable:$true] %s352
          %358 = dma.vmem_to_hbm [thread:$0]  %s353, 128, %s351, %s338, 32, 32, 2
        $region48: #{tpu_custom_call.1} parent=31 // pred_fallthru
          _
      $region32: #{tpu_custom_call.1} parent=5 // pred_fallthru
        _
      %p359 = scmp.le.s32.totalorder 2, %s17
      // Predicated region
      $region49: #{tpu_custom_call.1} parent=5 // pred_check
        %p360 = pneg %p359
      $region50: #{tpu_custom_call.1} parent=5 // pred_check_branch
        %362 = sbr.rel (%p360) target = $region52
      $region51: #{tpu_custom_call.1} parent=5 // pred_region
        %s363 = ssub.s32 %s17, 2
        // Predicated region
        $region53: #{tpu_custom_call.1} parent=51 // pred_check
          %p364 = pneg %p130
        $region54: #{tpu_custom_call.1} parent=51 // pred_check_branch
          %366 = sbr.rel (%p364) target = $region56
        $region55: #{tpu_custom_call.1} parent=51 // pred_region
          %s367 = sand.u32 %s115, 1
          %s368 = scalar_lea.sflag [#allocation4], %s367
          %s369 = sand.u32 %s115, 1
          %s370 = smul.addr %s369, 8
          %s371 = scalar_lea.vmem [#allocation9], %s370
          %372 = dma.done %s368, 128
        $region56: #{tpu_custom_call.1} parent=51 // pred_fallthru
          _
      $region52: #{tpu_custom_call.1} parent=5 // pred_fallthru
        _
    $region6: #{tpu_custom_call.1} parent=1 // loop_footer
      %s21 = sadd.s32 1, %s17
    $region7: #{tpu_custom_call.1} parent=1 // loop_footer_branch
      %16 = sbr.rel target = $region3
    $region8: #{tpu_custom_call.1} parent=1 // loop_exit
      _
    %373 = vsyncpa [#allocation3], 1
    %s374 = scalar_lea.sflag [#allocation3], 1
    %375 = vsyncpa %s374, 1
    %376 = vsyncpa [#allocation4], 1
    %s377 = scalar_lea.sflag [#allocation4], 1
    %378 = vsyncpa %s377, 1
    %379 = vsyncpa [#allocation5], 1
    %s380 = scalar_lea.sflag [#allocation5], 1
    %381 = vsyncpa %s380, 1
    %382 = vsyncpa [#allocation6], 1
    %s383 = scalar_lea.sflag [#allocation6], 1
    %384 = vsyncpa %s383, 1

</llo_original>
